<compile_context>
chip_gen: v5e
topology: v5e:2x2
jax: 0.10.0
libtpu: 0.0.40
codegen_flags: <defaults>
</compile_context>

<pallas_src>
import jax
import jax.numpy as jnp
from jax.experimental import pallas as pl
from jax.experimental.pallas import tpu as pltpu


# ----------------------------------------------------------------------------
# Kernel
# ----------------------------------------------------------------------------
def global_pool_kernel(nf_ref, gf_ref, rows_ref, bl_ref,
                       wp_ref, wih_ref, whh_ref,
                       out_ref, a_ref):
    GB, N, F = nf_ref.shape

    x = nf_ref[...]                      # (GB, N, F) f32 node features
    h = gf_ref[...]                      # (GB, F)    f32 graph feats / GRU hidden

    # Packed small parameters: one (8, 3F) VMEM block, sliced at lane 0.
    w_ln = rows_ref[0:1, 0:F]            # (1, F)  logit weight, node part
    w_lg = rows_ref[1:2, 0:F]            # (1, F)  logit weight, graph part
    b_p = rows_ref[2:3, 0:F]             # (1, F)  projection bias
    b_ih = rows_ref[3:4, :]              # (1, 3F) GRU input bias  [r|z|n]
    b_hh = rows_ref[4:5, :]              # (1, 3F) GRU hidden bias [r|z|n]

    # ---- compute_logits: Linear(cat([relu(g) bcast, node]), 1) + LeakyReLU --
    # Output width is 1 -> keep it off the MXU: elementwise mul + lane reduce.
    hg = jnp.maximum(h, 0.0)                                          # relu(g)
    node_logit = jnp.sum(x * w_ln, axis=-1)                           # (GB, N)
    graph_logit = jnp.sum(hg * w_lg, axis=-1, keepdims=True)          # (GB, 1)
    logit = node_logit + graph_logit + bl_ref[0]                      # (GB, N)
    z = jnp.where(logit >= 0.0, logit, 0.01 * logit)                  # LeakyReLU(0.01)

    # ---- softmax_nodes over each graph's nodes ------------------------------
    # Exact divide (not approx reciprocal): sum(a) == 1 is required so the
    # pool-before-project algebra below keeps the b_p term unscaled.
    m = jnp.max(z, axis=-1, keepdims=True)
    e = jnp.exp(z - m)
    a = e / jnp.sum(e, axis=-1, keepdims=True)                        # (GB, N)

    # ---- project_nodes + weighted sum_nodes, reordered ----------------------
    # sum_n a*(x @ W_p + b_p) == (sum_n a*x) @ W_p + b_p  since sum_n a == 1.
    # TODO(synk): nn.Dropout is identity in eval mode; training dropout not implemented.
    pooled = jnp.sum(a[:, :, None] * x, axis=1)                       # (GB, F)
    g_repr = jnp.dot(pooled.astype(wp_ref.dtype), wp_ref[...],
                     preferred_element_type=jnp.float32) + b_p        # (GB, F)
    context = jnp.where(g_repr > 0.0, g_repr,
                        jnp.exp(jnp.minimum(g_repr, 0.0)) - 1.0)      # ELU(alpha=1)

    # ---- GRUCell(context, h): two fused (., F) @ (F, 3F) bf16 MXU matmuls ---
    # Gate column order is [r | z | n] (PyTorch convention).
    gi = jnp.dot(context.astype(wih_ref.dtype), wih_ref[...],
                 preferred_element_type=jnp.float32) + b_ih           # (GB, 3F)
    gh = jnp.dot(h.astype(whh_ref.dtype), whh_ref[...],
                 preferred_element_type=jnp.float32) + b_hh           # (GB, 3F)
    r = jax.nn.sigmoid(gi[:, 0:F] + gh[:, 0:F])
    u = jax.nn.sigmoid(gi[:, F:2 * F] + gh[:, F:2 * F])
    n = jnp.tanh(gi[:, 2 * F:] + r * gh[:, 2 * F:])
    h_new = (1.0 - u) * n + u * h                                     # (GB, F)

    # Lane-dense stores: the output blocks may be flattened per-step slabs.
    out_ref[...] = h_new.reshape(out_ref.shape)
    a_ref[...] = a.reshape(a_ref.shape)


# ----------------------------------------------------------------------------
# Wrapper-side helpers (all run at trace time, once)
# ----------------------------------------------------------------------------
def _pick_graphs_per_step(G, N, F, node_tile_budget_bytes=4 << 20):
    """Pick graphs-per-step GB: a divisor of G (no padding copy), sublane-
    aligned blocks, node tile within a VMEM budget, and >=2 grid steps when
    possible so v7x can shard the 'parallel' axis across both TensorCores."""
    cap = max(1, node_tile_budget_bytes // (N * F * 4))
    divisors = [d for d in range(1, G + 1) if G % d == 0 and d <= cap]
    if not divisors:
        return 1

    def score(d):
        n_steps = G // d
        aligned = (d % 8 == 0) or (n_steps == 1)
        return (n_steps >= 2 and aligned, aligned, d)

    return max(divisors, key=score)


def _dense_out_layout(block_rows, width, n_steps):
    """Per-step output slab layout.

    Each grid step logically emits a (block_rows, width) slab.  When possible
    flatten it to (r, w) with w a multiple of 128 (lane-dense, unmasked vst)
    and r a multiple of 8 (or the trivially conforming single-step case).
    Otherwise fall back to the natural (block_rows, width) block."""
    total = block_rows * width
    if total % 128 == 0:
        for k in range(total // 128, 0, -1):
            w = 128 * k
            if total % w:
                continue
            r = total // w
            if r % 8 == 0 or n_steps == 1:
                return r, w
    return block_rows, width


def _vmem_bytes_estimate(GB, N, F, h_layout, a_layout):
    f32, bf16 = 4, 2
    nbytes = 2 * GB * N * F * f32              # node-feat tile (double buffered)
    nbytes += 2 * GB * F * f32                 # graph-feat tile
    nbytes += 2 * 8 * 3 * F * f32              # packed small params
    nbytes += 2 * (F * F + 2 * F * 3 * F) * bf16   # weight blocks
    nbytes += 2 * (h_layout[0] * h_layout[1] + a_layout[0] * a_layout[1]) * f32
    return nbytes


def prepare_params(params, matmul_dtype=jnp.bfloat16):
    """One-time parameter reformatting (hoisted out of the per-call path).

    params = (w_ln, w_lg, b_l, w_p, b_p, w_ih, w_hh, b_ih, b_hh) with
    w_ln/w_lg: (F, 1), b_l: (1, 1), w_p: (F, F), b_p: (1, F),
    w_ih/w_hh: (3, F, F) in gate order (r, z, n), b_ih/b_hh: (3, 1, F)."""
    w_ln, w_lg, b_l, w_p, b_p, w_ih, w_hh, b_ih, b_hh = params
    F = w_p.shape[0]

    rows = jnp.zeros((8, 3 * F), jnp.float32)          # packed small row params
    rows = rows.at[0, :F].set(w_ln[:, 0])
    rows = rows.at[1, :F].set(w_lg[:, 0])
    rows = rows.at[2, :F].set(b_p[0])
    rows = rows.at[3, :].set(b_ih.reshape(3 * F))
    rows = rows.at[4, :].set(b_hh.reshape(3 * F))

    b_l_s = b_l.reshape(1)                                       # scalar -> SMEM
    w_ih_cat = jnp.transpose(w_ih, (1, 0, 2)).reshape(F, 3 * F)  # (F, 3F) [r|z|n]
    w_hh_cat = jnp.transpose(w_hh, (1, 0, 2)).reshape(F, 3 * F)

    return (rows, b_l_s,
            w_p.astype(matmul_dtype),
            w_ih_cat.astype(matmul_dtype),
            w_hh_cat.astype(matmul_dtype))


def global_pool(node_feats, g_feats, prepared_params, *, graphs_per_step=None):
    """Run one GlobalPool readout step. Returns (updated g_feats (G,F), node weights (G,N))."""
    rows, b_l, w_p, w_ih_cat, w_hh_cat = prepared_params
    G, N, F = node_feats.shape

    if graphs_per_step is None:
        GB = _pick_graphs_per_step(G, N, F)
    else:
        GB = max(1, min(int(graphs_per_step), G))

    # Auto-picked GB divides G (no padding copy); pad only for an explicit GB.
    G_pad = ((G + GB - 1) // GB) * GB
    if G_pad != G:
        node_feats = jnp.concatenate(
            [node_feats, jnp.zeros((G_pad - G, N, F), node_feats.dtype)], axis=0)
        g_feats_in = jnp.concatenate(
            [g_feats, jnp.zeros((G_pad - G, F), g_feats.dtype)], axis=0)
    else:
        g_feats_in = g_feats
    n_steps = G_pad // GB

    h_rows, h_w = _dense_out_layout(GB, F, n_steps)
    a_rows, a_w = _dense_out_layout(GB, N, n_steps)

    vmem_limit = int(min(32 * 2**20,
                         max(4 * 2**20,
                             4 * _vmem_bytes_estimate(GB, N, F,
                                                      (h_rows, h_w),
                                                      (a_rows, a_w)))))

    const2 = lambda g: (0, 0)

    out, a = pl.pallas_call(
        global_pool_kernel,
        grid=(n_steps,),
        in_specs=[
            pl.BlockSpec((GB, N, F), lambda g: (g, 0, 0)),           # node feats
            pl.BlockSpec((GB, F), lambda g: (g, 0)),                 # graph feats
            pl.BlockSpec((8, 3 * F), const2),                        # packed small params
            pl.BlockSpec(memory_space=pltpu.MemorySpace.SMEM),       # logit bias scalar
            pl.BlockSpec((F, F), const2),                            # w_p      (bf16)
            pl.BlockSpec((F, 3 * F), const2),                        # w_ih cat (bf16)
            pl.BlockSpec((F, 3 * F), const2),                        # w_hh cat (bf16)
        ],
        out_specs=[
            pl.BlockSpec((h_rows, h_w), lambda g: (g, 0)),           # updated g_feats
            pl.BlockSpec((a_rows, a_w), lambda g: (g, 0)),           # node weights
        ],
        out_shape=[
            jax.ShapeDtypeStruct((n_steps * h_rows, h_w), jnp.float32),
            jax.ShapeDtypeStruct((n_steps * a_rows, a_w), jnp.float32),
        ],
        compiler_params=pltpu.CompilerParams(
            dimension_semantics=("parallel",),
            vmem_limit_bytes=vmem_limit),
    )(node_feats, g_feats_in, rows, b_l, w_p, w_ih_cat, w_hh_cat)

    return out.reshape(G_pad, F)[:G], a.reshape(G_pad, N)[:G]


# ----------------------------------------------------------------------------
# Pure-JAX reference (mirrors the PyTorch forward, eval mode, full f32)
# ----------------------------------------------------------------------------
def reference(node_feats, g_feats, params):
    w_ln, w_lg, b_l, w_p, b_p, w_ih, w_hh, b_ih, b_hh = params
    hg = jnp.maximum(g_feats, 0.0)                                   # (G, F)
    logit = (node_feats @ w_ln)[..., 0] + (hg @ w_lg) + b_l[0, 0]    # (G, N)
    z = jnp.where(logit >= 0.0, logit, 0.01 * logit)
    a = jax.nn.softmax(z, axis=-1)                                   # (G, N)
    hv = node_feats @ w_p + b_p                                      # (G, N, F)
    g_repr = jnp.sum(a[..., None] * hv, axis=1)                      # (G, F)
    ctx = jnp.where(g_repr > 0.0, g_repr, jnp.exp(jnp.minimum(g_repr, 0.0)) - 1.0)
    r = jax.nn.sigmoid(ctx @ w_ih[0] + b_ih[0] + g_feats @ w_hh[0] + b_hh[0])
    u = jax.nn.sigmoid(ctx @ w_ih[1] + b_ih[1] + g_feats @ w_hh[1] + b_hh[1])
    n = jnp.tanh(ctx @ w_ih[2] + b_ih[2] + r * (g_feats @ w_hh[2] + b_hh[2]))
    return (1.0 - u) * n + u * g_feats, a


def make_params(key, F):
    ks = jax.random.split(key, 9)
    scale = 0.1
    w_ln = scale * jax.random.normal(ks[0], (F, 1), jnp.float32)
    w_lg = scale * jax.random.normal(ks[1], (F, 1), jnp.float32)
    b_l = scale * jax.random.normal(ks[2], (1, 1), jnp.float32)
    w_p = scale * jax.random.normal(ks[3], (F, F), jnp.float32)
    b_p = scale * jax.random.normal(ks[4], (1, F), jnp.float32)
    w_ih = scale * jax.random.normal(ks[5], (3, F, F), jnp.float32)
    w_hh = scale * jax.random.normal(ks[6], (3, F, F), jnp.float32)
    b_ih = scale * jax.random.normal(ks[7], (3, 1, F), jnp.float32)
    b_hh = scale * jax.random.normal(ks[8], (3, 1, F), jnp.float32)
    return (w_ln, w_lg, b_l, w_p, b_p, w_ih, w_hh, b_ih, b_hh)


if __name__ == "__main__":
    G, N, F = 16, 8, 32                      # 16 graphs, 8 nodes each, feat_size 32
    key = jax.random.PRNGKey(0)
    k_nf, k_gf, k_p = jax.random.split(key, 3)
    node_feats = jax.random.normal(k_nf, (G, N, F), jnp.float32)
    g_feats = jax.random.normal(k_gf, (G, F), jnp.float32)
    params = make_params(k_p, F)

    prepped = prepare_params(params)          # one-time, out of the hot path
    out, a = global_pool(node_feats, g_feats, prepped)
    out = jax.block_until_ready(out)
    a = jax.block_until_ready(a)

    ref_out, ref_a = reference(node_feats, g_feats, params)
    assert out.shape == (G, F) and a.shape == (G, N)
    # Attention weights are computed entirely in f32 with an exact softmax
    # divide -> tight match.
    assert jnp.allclose(a, ref_a, atol=1e-4, rtol=1e-4)
    # The graph-state path uses bf16 MXU operands (projection + GRU) with f32
    # accumulation: ~2^-9 relative error per operand over F=32-term
    # contractions -> few e-3 typical deviation vs the full-f32 reference.
    assert jnp.allclose(out, ref_out, atol=2.5e-2, rtol=2.5e-2)

    print("KERNEL_OK")
</pallas_src>

<mosaic_0001>
module attributes {stable_mosaic.version = 11 : i64} {
  func.func @global_pool_kernel(%arg0: i32, %arg1: memref<8x8x32xf32, #tpu.memory_space<vmem>>, %arg2: memref<8x32xf32, #tpu.memory_space<vmem>>, %arg3: memref<8x96xf32, #tpu.memory_space<vmem>>, %arg4: memref<1xf32, #tpu.memory_space<smem>>, %arg5: memref<32x32xbf16, #tpu.memory_space<vmem>>, %arg6: memref<32x96xbf16, #tpu.memory_space<vmem>>, %arg7: memref<32x96xbf16, #tpu.memory_space<vmem>>, %arg8: memref<8x32xf32, #tpu.memory_space<vmem>>, %arg9: memref<8x8xf32, #tpu.memory_space<vmem>>) attributes {dimension_semantics = [#tpu.dimension_semantics<parallel>], iteration_bounds = array<i64: 2>, scalar_prefetch = 0 : i64, scratch_operands = 0 : i64, tpu.core_type = #tpu.core_type<tc>, window_params = [{transform_indices = @transform_0, window_bounds = array<i64: 8, 8, 32>}, {transform_indices = @transform_1, window_bounds = array<i64: 8, 32>}, {pipeline_mode = #tpu.pipeline_mode<synchronous>, transform_indices = @transform_2, window_bounds = array<i64: 8, 96>}, {transform_indices = @transform_3, window_bounds = array<i64: 1>}, {pipeline_mode = #tpu.pipeline_mode<synchronous>, transform_indices = @transform_4, window_bounds = array<i64: 32, 32>}, {pipeline_mode = #tpu.pipeline_mode<synchronous>, transform_indices = @transform_5, window_bounds = array<i64: 32, 96>}, {pipeline_mode = #tpu.pipeline_mode<synchronous>, transform_indices = @transform_6, window_bounds = array<i64: 32, 96>}, {transform_indices = @transform_7, window_bounds = array<i64: 8, 32>}, {transform_indices = @transform_8, window_bounds = array<i64: 8, 8>}]} {
    %c0 = arith.constant 0 : index
    %c0_0 = arith.constant 0 : index
    %c0_1 = arith.constant 0 : index
    %0 = vector.load %arg1[%c0, %c0_0, %c0_1] : memref<8x8x32xf32, #tpu.memory_space<vmem>>, vector<8x8x32xf32>
    %c0_2 = arith.constant 0 : index
    %c0_3 = arith.constant 0 : index
    %1 = vector.load %arg2[%c0_2, %c0_3] : memref<8x32xf32, #tpu.memory_space<vmem>>, vector<8x32xf32>
    %c0_4 = arith.constant 0 : index
    %c0_5 = arith.constant 0 : index
    %2 = vector.load %arg3[%c0_4, %c0_5] : memref<8x96xf32, #tpu.memory_space<vmem>>, vector<1x32xf32>
    %c1 = arith.constant 1 : index
    %c0_6 = arith.constant 0 : index
    %3 = vector.load %arg3[%c1, %c0_6] : memref<8x96xf32, #tpu.memory_space<vmem>>, vector<1x32xf32>
    %c2 = arith.constant 2 : index
    %c0_7 = arith.constant 0 : index
    %4 = vector.load %arg3[%c2, %c0_7] : memref<8x96xf32, #tpu.memory_space<vmem>>, vector<1x32xf32>
    %c3 = arith.constant 3 : index
    %c0_8 = arith.constant 0 : index
    %5 = vector.load %arg3[%c3, %c0_8] : memref<8x96xf32, #tpu.memory_space<vmem>>, vector<1x96xf32>
    %c4 = arith.constant 4 : index
    %c0_9 = arith.constant 0 : index
    %6 = vector.load %arg3[%c4, %c0_9] : memref<8x96xf32, #tpu.memory_space<vmem>>, vector<1x96xf32>
    %cst = arith.constant 0.000000e+00 : f32
    %7 = vector.broadcast %cst : f32 to vector<8x32xf32>
    %8 = arith.maximumf %1, %7 : vector<8x32xf32>
    %9 = vector.shape_cast %2 : vector<1x32xf32> to vector<1x1x32xf32>
    %10 = vector.broadcast %9 : vector<1x1x32xf32> to vector<8x8x32xf32>
    %11 = arith.mulf %0, %10 : vector<8x8x32xf32>
    %cst_10 = arith.constant dense<0.000000e+00> : vector<8x8xf32>
    %12 = vector.multi_reduction <add>, %11, %cst_10 [2] : vector<8x8x32xf32> to vector<8x8xf32>
    %13 = vector.broadcast %3 : vector<1x32xf32> to vector<8x32xf32>
    %14 = arith.mulf %8, %13 : vector<8x32xf32>
    %cst_11 = arith.constant dense<0.000000e+00> : vector<8xf32>
    %15 = vector.multi_reduction <add>, %14, %cst_11 [1] : vector<8x32xf32> to vector<8xf32>
    %16 = vector.shape_cast %15 : vector<8xf32> to vector<8x1xf32>
    %17 = vector.broadcast %16 : vector<8x1xf32> to vector<8x8xf32>
    %18 = arith.addf %12, %17 : vector<8x8xf32>
    %c0_12 = arith.constant 0 : index
    %19 = memref.load %arg4[%c0_12] : memref<1xf32, #tpu.memory_space<smem>>
    %20 = vector.broadcast %19 : f32 to vector<8x8xf32>
    %21 = arith.addf %18, %20 : vector<8x8xf32>
    %cst_13 = arith.constant 0.000000e+00 : f32
    %22 = vector.broadcast %cst_13 : f32 to vector<8x8xf32>
    %23 = arith.cmpf oge, %21, %22 : vector<8x8xf32>
    %cst_14 = arith.constant 0.00999999977 : f32
    %24 = vector.broadcast %cst_14 : f32 to vector<8x8xf32>
    %25 = arith.mulf %24, %21 : vector<8x8xf32>
    %26 = arith.select %23, %21, %25 : vector<8x8xi1>, vector<8x8xf32>
    %cst_15 = arith.constant dense<0xFF800000> : vector<8xf32>
    %27 = vector.multi_reduction <maximumf>, %26, %cst_15 [1] : vector<8x8xf32> to vector<8xf32>
    %28 = vector.shape_cast %27 : vector<8xf32> to vector<8x1xf32>
    %29 = vector.broadcast %28 : vector<8x1xf32> to vector<8x8xf32>
    %30 = arith.subf %26, %29 : vector<8x8xf32>
    %31 = math.exp %30 : vector<8x8xf32>
    %cst_16 = arith.constant dense<0.000000e+00> : vector<8xf32>
    %32 = vector.multi_reduction <add>, %31, %cst_16 [1] : vector<8x8xf32> to vector<8xf32>
    %33 = vector.shape_cast %32 : vector<8xf32> to vector<8x1xf32>
    %34 = vector.broadcast %33 : vector<8x1xf32> to vector<8x8xf32>
    %35 = arith.divf %31, %34 : vector<8x8xf32>
    %36 = vector.shape_cast %35 : vector<8x8xf32> to vector<8x8x1xf32>
    %37 = vector.broadcast %36 : vector<8x8x1xf32> to vector<8x8x32xf32>
    %38 = arith.mulf %37, %0 : vector<8x8x32xf32>
    %cst_17 = arith.constant dense<0.000000e+00> : vector<8x32xf32>
    %39 = vector.multi_reduction <add>, %38, %cst_17 [1] : vector<8x8x32xf32> to vector<8x32xf32>
    %40 = arith.truncf %39 : vector<8x32xf32> to vector<8x32xbf16>
    %c0_18 = arith.constant 0 : index
    %c0_19 = arith.constant 0 : index
    %41 = vector.load %arg5[%c0_18, %c0_19] : memref<32x32xbf16, #tpu.memory_space<vmem>>, vector<32x32xbf16>
    %cst_20 = arith.constant dense<0.000000e+00> : vector<8x32xf32>
    %42 = tpu.matmul %40, %41, %cst_20 {dimension_numbers = #tpu.dot_dimension_numbers<[1], [0], [0], [1], [0, 0, 1, 1], [], []>} : vector<8x32xbf16>, vector<32x32xbf16>, vector<8x32xf32> -> vector<8x32xf32>
    %43 = vector.broadcast %4 : vector<1x32xf32> to vector<8x32xf32>
    %44 = arith.addf %42, %43 : vector<8x32xf32>
    %cst_21 = arith.constant 0.000000e+00 : f32
    %45 = vector.broadcast %cst_21 : f32 to vector<8x32xf32>
    %46 = arith.cmpf ogt, %44, %45 : vector<8x32xf32>
    %cst_22 = arith.constant 0.000000e+00 : f32
    %47 = vector.broadcast %cst_22 : f32 to vector<8x32xf32>
    %48 = arith.minimumf %44, %47 : vector<8x32xf32>
    %49 = math.exp %48 : vector<8x32xf32>
    %cst_23 = arith.constant 1.000000e+00 : f32
    %50 = vector.broadcast %cst_23 : f32 to vector<8x32xf32>
    %51 = arith.subf %49, %50 : vector<8x32xf32>
    %52 = arith.select %46, %44, %51 : vector<8x32xi1>, vector<8x32xf32>
    %53 = arith.truncf %52 : vector<8x32xf32> to vector<8x32xbf16>
    %c0_24 = arith.constant 0 : index
    %c0_25 = arith.constant 0 : index
    %54 = vector.load %arg6[%c0_24, %c0_25] : memref<32x96xbf16, #tpu.memory_space<vmem>>, vector<32x96xbf16>
    %cst_26 = arith.constant dense<0.000000e+00> : vector<8x96xf32>
    %55 = tpu.matmul %53, %54, %cst_26 {dimension_numbers = #tpu.dot_dimension_numbers<[1], [0], [0], [1], [0, 0, 1, 1], [], []>} : vector<8x32xbf16>, vector<32x96xbf16>, vector<8x96xf32> -> vector<8x96xf32>
    %56 = vector.broadcast %5 : vector<1x96xf32> to vector<8x96xf32>
    %57 = arith.addf %55, %56 : vector<8x96xf32>
    %58 = arith.truncf %1 : vector<8x32xf32> to vector<8x32xbf16>
    %c0_27 = arith.constant 0 : index
    %c0_28 = arith.constant 0 : index
    %59 = vector.load %arg7[%c0_27, %c0_28] : memref<32x96xbf16, #tpu.memory_space<vmem>>, vector<32x96xbf16>
    %cst_29 = arith.constant dense<0.000000e+00> : vector<8x96xf32>
    %60 = tpu.matmul %58, %59, %cst_29 {dimension_numbers = #tpu.dot_dimension_numbers<[1], [0], [0], [1], [0, 0, 1, 1], [], []>} : vector<8x32xbf16>, vector<32x96xbf16>, vector<8x96xf32> -> vector<8x96xf32>
    %61 = vector.broadcast %6 : vector<1x96xf32> to vector<8x96xf32>
    %62 = arith.addf %60, %61 : vector<8x96xf32>
    %63 = vector.extract_strided_slice %57 {offsets = [0, 0], sizes = [8, 32], strides = [1, 1]} : vector<8x96xf32> to vector<8x32xf32>
    %64 = vector.extract_strided_slice %62 {offsets = [0, 0], sizes = [8, 32], strides = [1, 1]} : vector<8x96xf32> to vector<8x32xf32>
    %65 = arith.addf %63, %64 : vector<8x32xf32>
    %66 = arith.negf %65 : vector<8x32xf32>
    %67 = math.exp %66 : vector<8x32xf32>
    %cst_30 = arith.constant 1.000000e+00 : f32
    %68 = vector.broadcast %cst_30 : f32 to vector<8x32xf32>
    %69 = arith.addf %68, %67 : vector<8x32xf32>
    %70 = arith.divf %68, %69 : vector<8x32xf32>
    %71 = vector.extract_strided_slice %57 {offsets = [0, 32], sizes = [8, 32], strides = [1, 1]} : vector<8x96xf32> to vector<8x32xf32>
    %72 = vector.extract_strided_slice %62 {offsets = [0, 32], sizes = [8, 32], strides = [1, 1]} : vector<8x96xf32> to vector<8x32xf32>
    %73 = arith.addf %71, %72 : vector<8x32xf32>
    %74 = arith.negf %73 : vector<8x32xf32>
    %75 = math.exp %74 : vector<8x32xf32>
    %cst_31 = arith.constant 1.000000e+00 : f32
    %76 = vector.broadcast %cst_31 : f32 to vector<8x32xf32>
    %77 = arith.addf %76, %75 : vector<8x32xf32>
    %78 = arith.divf %76, %77 : vector<8x32xf32>
    %79 = vector.extract_strided_slice %57 {offsets = [0, 64], sizes = [8, 32], strides = [1, 1]} : vector<8x96xf32> to vector<8x32xf32>
    %80 = vector.extract_strided_slice %62 {offsets = [0, 64], sizes = [8, 32], strides = [1, 1]} : vector<8x96xf32> to vector<8x32xf32>
    %81 = arith.mulf %70, %80 : vector<8x32xf32>
    %82 = arith.addf %79, %81 : vector<8x32xf32>
    %83 = math.tanh %82 : vector<8x32xf32>
    %cst_32 = arith.constant 1.000000e+00 : f32
    %84 = vector.broadcast %cst_32 : f32 to vector<8x32xf32>
    %85 = arith.subf %84, %78 : vector<8x32xf32>
    %86 = arith.mulf %85, %83 : vector<8x32xf32>
    %87 = arith.mulf %78, %1 : vector<8x32xf32>
    %88 = arith.addf %86, %87 : vector<8x32xf32>
    %c0_33 = arith.constant 0 : index
    %c0_34 = arith.constant 0 : index
    %89 = vector.load %arg8[%c0_33, %c0_34] : memref<8x32xf32, #tpu.memory_space<vmem>>, vector<8x32xf32>
    tpu.vector_store %arg8[%c0_33, %c0_34], %88 {strides = array<i32>} : memref<8x32xf32, #tpu.memory_space<vmem>>, vector<8x32xf32>,
    %c0_35 = arith.constant 0 : index
    %c0_36 = arith.constant 0 : index
    %90 = vector.load %arg9[%c0_35, %c0_36] : memref<8x8xf32, #tpu.memory_space<vmem>>, vector<8x8xf32>
    tpu.vector_store %arg9[%c0_35, %c0_36], %35 {strides = array<i32>} : memref<8x8xf32, #tpu.memory_space<vmem>>, vector<8x8xf32>,
    return
  }
  func.func @transform_0(%arg0: i32) -> (i32, i32, i32) {
    %c0_i32 = arith.constant 0 : i32
    %c0_i32_0 = arith.constant 0 : i32
    %c0_i32_1 = arith.constant 0 : i32
    return %arg0, %c0_i32, %c0_i32_0 : i32, i32, i32
  }
  func.func @transform_1(%arg0: i32) -> (i32, i32) {
    %c0_i32 = arith.constant 0 : i32
    %c0_i32_0 = arith.constant 0 : i32
    return %arg0, %c0_i32 : i32, i32
  }
  func.func @transform_2(%arg0: i32) -> (i32, i32) {
    %c0_i32 = arith.constant 0 : i32
    %c0_i32_0 = arith.constant 0 : i32
    %c0_i32_1 = arith.constant 0 : i32
    return %c0_i32, %c0_i32_0 : i32, i32
  }
  func.func @transform_3(%arg0: i32) -> i32 {
    %c0_i32 = arith.constant 0 : i32
    %c0_i32_0 = arith.constant 0 : i32
    return %c0_i32 : i32
  }
  func.func @transform_4(%arg0: i32) -> (i32, i32) {
    %c0_i32 = arith.constant 0 : i32
    %c0_i32_0 = arith.constant 0 : i32
    %c0_i32_1 = arith.constant 0 : i32
    return %c0_i32, %c0_i32_0 : i32, i32
  }
  func.func @transform_5(%arg0: i32) -> (i32, i32) {
    %c0_i32 = arith.constant 0 : i32
    %c0_i32_0 = arith.constant 0 : i32
    %c0_i32_1 = arith.constant 0 : i32
    return %c0_i32, %c0_i32_0 : i32, i32
  }
  func.func @transform_6(%arg0: i32) -> (i32, i32) {
    %c0_i32 = arith.constant 0 : i32
    %c0_i32_0 = arith.constant 0 : i32
    %c0_i32_1 = arith.constant 0 : i32
    return %c0_i32, %c0_i32_0 : i32, i32
  }
  func.func @transform_7(%arg0: i32) -> (i32, i32) {
    %c0_i32 = arith.constant 0 : i32
    %c0_i32_0 = arith.constant 0 : i32
    return %arg0, %c0_i32 : i32, i32
  }
  func.func @transform_8(%arg0: i32) -> (i32, i32) {
    %c0_i32 = arith.constant 0 : i32
    %c0_i32_0 = arith.constant 0 : i32
    return %arg0, %c0_i32 : i32, i32
  }
}

</mosaic_0001>

<llo_original>
// kernel: tpu_custom_call.1
$region0: #{tpu_custom_call.1}
  #allocation0 [shape = 'u32[]', space=smem, size = 0x4, offset = 0x4, fixed_abs, tag = 'smem constant byte address 0x4 - core index']
  #allocation1 [shape = 'u32[72,128]{1,0:T(1,128)}', space=vmem, size = 0x9000, scoped, tag = 'internal scratch']
  #allocation2 [shape = 'f32[1]{0:T(128)S(6)}', space=smem, size = 0x200, scoped, tag = 'scoped memory for tpu_custom_call.1']
  %s0 = inlined_call_operand.hbm [shape: f32[16,8,32], index: 0, kind: input, shape index: {}]
  %s1 = inlined_call_operand.hbm [shape: f32[16,32], index: 1, kind: input, shape index: {}]
  %s2 = inlined_call_operand.hbm [shape: f32[8,96], index: 2, kind: input, shape index: {}]
  %s3 = inlined_call_operand.<no memory space> [shape: f32[1], index: 3, kind: input, shape index: {}]
  %s4 = inlined_call_operand.hbm [shape: bf16[32,32], index: 4, kind: input, shape index: {}]
  %s5 = inlined_call_operand.hbm [shape: bf16[32,96], index: 5, kind: input, shape index: {}]
  %s6 = inlined_call_operand.hbm [shape: bf16[32,96], index: 6, kind: input, shape index: {}]
  %s7 = inlined_call_operand.hbm [shape: f32[16,32], index: 7, kind: output, shape index: {0}]
  %s8 = inlined_call_operand.vmem [shape: f32[16,8], index: 8, kind: output, shape index: {1}]
  %9 = xla_tuple %s7, %s8
  %s10 = sld [smem:[#allocation0]]
  $region93: #{tpu_custom_call.1} parent=0
    _
  %s12 = ssub.s32 1, %s10
  %s13 = scalar_select 0, %s12, %s10
  %14 = sst [smem:[#allocation2]] %s3
  $region1: #{tpu_custom_call.1} parent=0
    #allocation3 [shape = 'u8[65536]{0}', space=vmem, size = 0x10000, scoped, tag = 'input window, operand 0']
    #allocation4 [shape = 's32[2]{0}', space=sflag, size = 0x8, scoped, tag = 'scoped memory for tpu_custom_call.1']
    #allocation5 [shape = 's32[2]{0}', space=sflag, size = 0x8, scoped, tag = 'scoped memory for tpu_custom_call.1']
    #allocation6 [shape = 'u8[8192]{0}', space=vmem, size = 0x2000, scoped, tag = 'input window, operand 1']
    #allocation7 [shape = 's32[2]{0}', space=sflag, size = 0x8, scoped, tag = 'scoped memory for tpu_custom_call.1']
    #allocation8 [shape = 'u8[4096]{0}', space=vmem, size = 0x1000, scoped, tag = 'input window, operand 2, single buffered']
    #allocation9 [shape = 'u8[8192]{0}', space=vmem, size = 0x2000, scoped, tag = 'input window, operand 4, single buffered']
    #allocation10 [shape = 's32[1]{0}', space=sflag, size = 0x4, scoped, tag = 'scoped memory for tpu_custom_call.1']
    #allocation11 [shape = 'u8[8192]{0}', space=vmem, size = 0x2000, scoped, tag = 'input window, operand 5, single buffered']
    #allocation12 [shape = 'u8[8192]{0}', space=vmem, size = 0x2000, scoped, tag = 'input window, operand 6, single buffered']
    #allocation13 [shape = 's32[1]{0}', space=sflag, size = 0x4, scoped, tag = 'scoped memory for tpu_custom_call.1']
    #allocation14 [shape = 'u8[8192]{0}', space=vmem, size = 0x2000, scoped, tag = 'output window, operand 0']
    %15 = vsyncpa [#allocation4], 0
    %s16 = scalar_lea.sflag [#allocation4], 1
    %17 = vsyncpa %s16, 0
    %18 = vsyncpa [#allocation7], 0
    %s19 = scalar_lea.sflag [#allocation7], 1
    %20 = vsyncpa %s19, 0
    %21 = vsyncpa [#allocation10], 0
    %22 = vsyncpa [#allocation13], 0
    %23 = vsyncpa [#allocation5], 0
    %s24 = scalar_lea.sflag [#allocation5], 1
    %25 = vsyncpa %s24, 0
    loop: start=0, step=1, limit=4
    $region2: #{tpu_custom_call.1} parent=1 // loop_pre_header
      _
    $region3: #{tpu_custom_call.1} parent=1 // loop_header
      %s27 = sphi 0, %s31
      %p28 = scmp.ge.s32.totalorder %s27, 4
      %s37 = sphi 0, %s39
      %s40 = sphi 0, %s37
      %s41 = sphi 0, %s40
      %s57 = sphi 0, %s41
      %s63 = sphi 0, %s65
      %s66 = sphi 0, %s63
      %s67 = sphi 0, %s66
      %s83 = sphi 0, %s67
      %s87 = sphi 0, %s87
      %s89 = sphi 0, %s87
      %s90 = sphi 0, %s89
      %s104 = sphi 0, %s90
      %s108 = sphi 0, %s108
      %s110 = sphi 0, %s108
      %s111 = sphi 0, %s110
      %s125 = sphi 0, %s111
      %s129 = sphi 0, %s129
      %s131 = sphi 0, %s129
      %s132 = sphi 0, %s131
      %s146 = sphi 0, %s132
      %s150 = sphi 0, %s150
      %s152 = sphi 0, %s150
      %s153 = sphi 0, %s152
      %s167 = sphi 0, %s153
      %s171 = sphi 0, %s171
      %s173 = sphi 0, %s171
      %s174 = sphi 0, %s173
      %s188 = sphi 0, %s174
      %s194 = sphi 0, %s196
      %s197 = sphi 0, %s194
      %s198 = sphi 0, %s197
      %s214 = sphi 0, %s198
      %s220 = sphi 0, %s222
      %s223 = sphi 0, %s220
      %s224 = sphi 0, %s223
      %s240 = sphi 0, %s224
    $region4: #{tpu_custom_call.1} parent=1 // loop_header_branch
      %30 = sbr.rel (%p28) target = $region8
    $region5: #{tpu_custom_call.1} parent=1 // loop_body
      %s32 = ssub.s32 %s27, 1
      %s33 = ssub.s32 %s27, 2
      %s34 = sadd.s32 %s27, 1
      %s35 = ssub.s32 %s27, %s34
      %p36 = scmp.eq.s32.totalorder %s35, 0
      %s38 = sadd.s32 %s37, 1
      %s39 = scalar_select %p36, %s37, %s38
      %p42 = pneg %p36
      %p43 = scmp.eq.s32.totalorder %s27, 1
      %p44 = por %p42, %p43
      %p45 = scmp.ne.s32.totalorder %s37, %s40
      %p46 = scmp.eq.s32.totalorder %s27, 0
      %p47 = por %p45, %p46
      %p48 = scmp.ne.s32.totalorder %s37, %s40
      %p49 = scmp.eq.s32.totalorder %s32, 1
      %p50 = por %p48, %p49
      %p51 = scmp.ne.s32.totalorder %s40, %s41
      %p52 = scmp.eq.s32.totalorder %s32, 0
      %p53 = por %p51, %p52
      %p54 = scmp.ne.s32.totalorder %s40, %s41
      %p55 = scmp.eq.s32.totalorder %s33, 1
      %p56 = por %p54, %p55
      %p58 = scmp.ne.s32.totalorder %s41, %s57
      %p59 = scmp.eq.s32.totalorder %s33, 0
      %p60 = por %p58, %p59
      %s61 = ssub.s32 %s27, %s34
      %p62 = scmp.eq.s32.totalorder %s61, 0
      %s64 = sadd.s32 %s63, 1
      %s65 = scalar_select %p62, %s63, %s64
      %p68 = pneg %p62
      %p69 = scmp.eq.s32.totalorder %s27, 1
      %p70 = por %p68, %p69
      %p71 = scmp.ne.s32.totalorder %s63, %s66
      %p72 = scmp.eq.s32.totalorder %s27, 0
      %p73 = por %p71, %p72
      %p74 = scmp.ne.s32.totalorder %s63, %s66
      %p75 = scmp.eq.s32.totalorder %s32, 1
      %p76 = por %p74, %p75
      %p77 = scmp.ne.s32.totalorder %s66, %s67
      %p78 = scmp.eq.s32.totalorder %s32, 0
      %p79 = por %p77, %p78
      %p80 = scmp.ne.s32.totalorder %s66, %s67
      %p81 = scmp.eq.s32.totalorder %s33, 1
      %p82 = por %p80, %p81
      %p84 = scmp.ne.s32.totalorder %s67, %s83
      %p85 = scmp.eq.s32.totalorder %s33, 0
      %p86 = por %p84, %p85
      %s88 = sadd.s32 %s87, 1
      %p91 = scmp.eq.s32.totalorder %s27, 1
      %p92 = scmp.ne.s32.totalorder %s87, %s89
      %p93 = scmp.eq.s32.totalorder %s27, 0
      %p94 = por %p92, %p93
      %p95 = scmp.ne.s32.totalorder %s87, %s89
      %p96 = scmp.eq.s32.totalorder %s32, 1
      %p97 = por %p95, %p96
      %p98 = scmp.ne.s32.totalorder %s89, %s90
      %p99 = scmp.eq.s32.totalorder %s32, 0
      %p100 = por %p98, %p99
      %p101 = scmp.ne.s32.totalorder %s89, %s90
      %p102 = scmp.eq.s32.totalorder %s33, 1
      %p103 = por %p101, %p102
      %p105 = scmp.ne.s32.totalorder %s90, %s104
      %p106 = scmp.eq.s32.totalorder %s33, 0
      %p107 = por %p105, %p106
      %s109 = sadd.s32 %s108, 1
      %p112 = scmp.eq.s32.totalorder %s27, 1
      %p113 = scmp.ne.s32.totalorder %s108, %s110
      %p114 = scmp.eq.s32.totalorder %s27, 0
      %p115 = por %p113, %p114
      %p116 = scmp.ne.s32.totalorder %s108, %s110
      %p117 = scmp.eq.s32.totalorder %s32, 1
      %p118 = por %p116, %p117
      %p119 = scmp.ne.s32.totalorder %s110, %s111
      %p120 = scmp.eq.s32.totalorder %s32, 0
      %p121 = por %p119, %p120
      %p122 = scmp.ne.s32.totalorder %s110, %s111
      %p123 = scmp.eq.s32.totalorder %s33, 1
      %p124 = por %p122, %p123
      %p126 = scmp.ne.s32.totalorder %s111, %s125
      %p127 = scmp.eq.s32.totalorder %s33, 0
      %p128 = por %p126, %p127
      %s130 = sadd.s32 %s129, 1
      %p133 = scmp.eq.s32.totalorder %s27, 1
      %p134 = scmp.ne.s32.totalorder %s129, %s131
      %p135 = scmp.eq.s32.totalorder %s27, 0
      %p136 = por %p134, %p135
      %p137 = scmp.ne.s32.totalorder %s129, %s131
      %p138 = scmp.eq.s32.totalorder %s32, 1
      %p139 = por %p137, %p138
      %p140 = scmp.ne.s32.totalorder %s131, %s132
      %p141 = scmp.eq.s32.totalorder %s32, 0
      %p142 = por %p140, %p141
      %p143 = scmp.ne.s32.totalorder %s131, %s132
      %p144 = scmp.eq.s32.totalorder %s33, 1
      %p145 = por %p143, %p144
      %p147 = scmp.ne.s32.totalorder %s132, %s146
      %p148 = scmp.eq.s32.totalorder %s33, 0
      %p149 = por %p147, %p148
      %s151 = sadd.s32 %s150, 1
      %p154 = scmp.eq.s32.totalorder %s27, 1
      %p155 = scmp.ne.s32.totalorder %s150, %s152
      %p156 = scmp.eq.s32.totalorder %s27, 0
      %p157 = por %p155, %p156
      %p158 = scmp.ne.s32.totalorder %s150, %s152
      %p159 = scmp.eq.s32.totalorder %s32, 1
      %p160 = por %p158, %p159
      %p161 = scmp.ne.s32.totalorder %s152, %s153
      %p162 = scmp.eq.s32.totalorder %s32, 0
      %p163 = por %p161, %p162
      %p164 = scmp.ne.s32.totalorder %s152, %s153
      %p165 = scmp.eq.s32.totalorder %s33, 1
      %p166 = por %p164, %p165
      %p168 = scmp.ne.s32.totalorder %s153, %s167
      %p169 = scmp.eq.s32.totalorder %s33, 0
      %p170 = por %p168, %p169
      %s172 = sadd.s32 %s171, 1
      %p175 = scmp.eq.s32.totalorder %s27, 1
      %p176 = scmp.ne.s32.totalorder %s171, %s173
      %p177 = scmp.eq.s32.totalorder %s27, 0
      %p178 = por %p176, %p177
      %p179 = scmp.ne.s32.totalorder %s171, %s173
      %p180 = scmp.eq.s32.totalorder %s32, 1
      %p181 = por %p179, %p180
      %p182 = scmp.ne.s32.totalorder %s173, %s174
      %p183 = scmp.eq.s32.totalorder %s32, 0
      %p184 = por %p182, %p183
      %p185 = scmp.ne.s32.totalorder %s173, %s174
      %p186 = scmp.eq.s32.totalorder %s33, 1
      %p187 = por %p185, %p186
      %p189 = scmp.ne.s32.totalorder %s174, %s188
      %p190 = scmp.eq.s32.totalorder %s33, 0
      %p191 = por %p189, %p190
      %s192 = ssub.s32 %s27, %s34
      %p193 = scmp.eq.s32.totalorder %s192, 0
      %s195 = sadd.s32 %s194, 1
      %s196 = scalar_select %p193, %s194, %s195
      %p199 = pneg %p193
      %p200 = scmp.eq.s32.totalorder %s27, 1
      %p201 = por %p199, %p200
      %p202 = scmp.ne.s32.totalorder %s194, %s197
      %p203 = scmp.eq.s32.totalorder %s27, 0
      %p204 = por %p202, %p203
      %p205 = scmp.ne.s32.totalorder %s194, %s197
      %p206 = scmp.eq.s32.totalorder %s32, 1
      %p207 = por %p205, %p206
      %p208 = scmp.ne.s32.totalorder %s197, %s198
      %p209 = scmp.eq.s32.totalorder %s32, 0
      %p210 = por %p208, %p209
      %p211 = scmp.ne.s32.totalorder %s197, %s198
      %p212 = scmp.eq.s32.totalorder %s33, 1
      %p213 = por %p211, %p212
      %p215 = scmp.ne.s32.totalorder %s198, %s214
      %p216 = scmp.eq.s32.totalorder %s33, 0
      %p217 = por %p215, %p216
      %s218 = ssub.s32 %s27, %s34
      %p219 = scmp.eq.s32.totalorder %s218, 0
      %s221 = sadd.s32 %s220, 1
      %s222 = scalar_select %p219, %s220, %s221
      %p225 = pneg %p219
      %p226 = scmp.eq.s32.totalorder %s27, 1
      %p227 = por %p225, %p226
      %p228 = scmp.ne.s32.totalorder %s220, %s223
      %p229 = scmp.eq.s32.totalorder %s27, 0
      %p230 = por %p228, %p229
      %p231 = scmp.ne.s32.totalorder %s220, %s223
      %p232 = scmp.eq.s32.totalorder %s32, 1
      %p233 = por %p231, %p232
      %p234 = scmp.ne.s32.totalorder %s223, %s224
      %p235 = scmp.eq.s32.totalorder %s32, 0
      %p236 = por %p234, %p235
      %p237 = scmp.ne.s32.totalorder %s223, %s224
      %p238 = scmp.eq.s32.totalorder %s33, 1
      %p239 = por %p237, %p238
      %p241 = scmp.ne.s32.totalorder %s224, %s240
      %p242 = scmp.eq.s32.totalorder %s33, 0
      %p243 = por %p241, %p242
      %p244 = scmp.le.s32.totalorder 1, %s27
      %p245 = scmp.lt.s32.totalorder %s27, 3
      %p246 = pnand %p244, %p245
      %p247 = pneg %p246
      // Predicated region
      $region9: #{tpu_custom_call.1} parent=5 // pred_check
        _
      $region10: #{tpu_custom_call.1} parent=5 // pred_check_branch
        %249 = sbr.rel (%p246) target = $region12
      $region11: #{tpu_custom_call.1} parent=5 // pred_region
        %s250 = ssub.s32 %s27, 1
        // Predicated region
        $region13: #{tpu_custom_call.1} parent=11 // pred_check
          %p251 = pneg %p100
        $region14: #{tpu_custom_call.1} parent=11 // pred_check_branch
          %253 = sbr.rel (%p251) target = $region16
        $region15: #{tpu_custom_call.1} parent=11 // pred_region
          %255 = vsyncadd [#allocation7], 0
          %s257 = sshll.u32 %s2, 4
          %s258 = int_to_ptr.hbm [resolvable:$true] %s257
          %s259 = sshll.u32 [#allocation8], 4
          %s260 = int_to_ptr.vmem [resolvable:$true] %s259
          %262 = dma.hbm_to_vmem [thread:$0]  %s258, 128, %s260, [#allocation7]
        $region16: #{tpu_custom_call.1} parent=11 // pred_fallthru
          _
        // Predicated region
        $region17: #{tpu_custom_call.1} parent=11 // pred_check
          %p263 = pneg %p121
        $region18: #{tpu_custom_call.1} parent=11 // pred_check_branch
          %265 = sbr.rel (%p263) target = $region20
        $region19: #{tpu_custom_call.1} parent=11 // pred_region
          _
        $region20: #{tpu_custom_call.1} parent=11 // pred_fallthru
          _
        // Predicated region
        $region21: #{tpu_custom_call.1} parent=11 // pred_check
          %p266 = pneg %p142
        $region22: #{tpu_custom_call.1} parent=11 // pred_check_branch
          %268 = sbr.rel (%p266) target = $region24
        $region23: #{tpu_custom_call.1} parent=11 // pred_region
          %270 = vsyncadd [#allocation10], 0
          %s271 = sshll.u32 %s4, 4
          %s272 = int_to_ptr.hbm [resolvable:$true] %s271
          %s273 = sshll.u32 [#allocation9], 4
          %s274 = int_to_ptr.vmem [resolvable:$true] %s273
          %279 = dma.hbm_to_vmem [thread:$0]  %s272, 256, %s274, [#allocation10], 64, 64, 4
        $region24: #{tpu_custom_call.1} parent=11 // pred_fallthru
          _
        // Predicated region
        $region25: #{tpu_custom_call.1} parent=11 // pred_check
          %p280 = pneg %p163
        $region26: #{tpu_custom_call.1} parent=11 // pred_check_branch
          %282 = sbr.rel (%p280) target = $region28
        $region27: #{tpu_custom_call.1} parent=11 // pred_region
          %284 = vsyncadd [#allocation10], 0
          %s285 = sshll.u32 %s5, 4
          %s286 = int_to_ptr.hbm [resolvable:$true] %s285
          %s287 = sshll.u32 [#allocation11], 4
          %s288 = int_to_ptr.vmem [resolvable:$true] %s287
          %293 = dma.hbm_to_vmem [thread:$0]  %s286, 256, %s288, [#allocation10], 64, 64, 4
        $region28: #{tpu_custom_call.1} parent=11 // pred_fallthru
          _
        // Predicated region
        $region29: #{tpu_custom_call.1} parent=11 // pred_check
          %p294 = pneg %p184
        $region30: #{tpu_custom_call.1} parent=11 // pred_check_branch
          %296 = sbr.rel (%p294) target = $region32
        $region31: #{tpu_custom_call.1} parent=11 // pred_region
          %298 = vsyncadd [#allocation13], 0
          %s299 = sshll.u32 %s6, 4
          %s300 = int_to_ptr.hbm [resolvable:$true] %s299
          %s301 = sshll.u32 [#allocation12], 4
          %s302 = int_to_ptr.vmem [resolvable:$true] %s301
          %307 = dma.hbm_to_vmem [thread:$0]  %s300, 256, %s302, [#allocation13], 64, 64, 4
        $region32: #{tpu_custom_call.1} parent=11 // pred_fallthru
          _
      $region12: #{tpu_custom_call.1} parent=5 // pred_fallthru
        _
      %p308 = scmp.lt.s32.totalorder %s27, 2
      // Predicated region
      $region33: #{tpu_custom_call.1} parent=5 // pred_check
        %p309 = pneg %p308
      $region34: #{tpu_custom_call.1} parent=5 // pred_check_branch
        %311 = sbr.rel (%p309) target = $region36
      $region35: #{tpu_custom_call.1} parent=5 // pred_region
        // Predicated region
        $region37: #{tpu_custom_call.1} parent=35 // pred_check
          %p312 = pneg %p47
        $region38: #{tpu_custom_call.1} parent=35 // pred_check_branch
          %314 = sbr.rel (%p312) target = $region40
        $region39: #{tpu_custom_call.1} parent=35 // pred_region
          %s315 = sand.u32 %s37, 1
          %s316 = scalar_lea.sflag [#allocation4], %s315
          %s317 = sand.u32 %s37, 1
          %s318 = smul.addr %s317, 64
          %s319 = scalar_lea.vmem [#allocation3], %s318
          %s320 = smul.u32 8, %s27
          %322 = vsyncadd %s316, 0
          %s323 = smul.addr %s320, 8
          %s324 = scalar_lea.hbm %s0, %s323
          %s325 = sshll.u32 %s324, 4
          %s326 = int_to_ptr.hbm [resolvable:$true] %s325
          %s327 = sshll.u32 %s319, 4
          %s328 = int_to_ptr.vmem [resolvable:$true] %s327
          %333 = dma.hbm_to_vmem [thread:$0]  %s326, 1024, %s328, %s316, 128, 128, 8
        $region40: #{tpu_custom_call.1} parent=35 // pred_fallthru
          _
        // Predicated region
        $region41: #{tpu_custom_call.1} parent=35 // pred_check
          %p334 = pneg %p73
        $region42: #{tpu_custom_call.1} parent=35 // pred_check_branch
          %336 = sbr.rel (%p334) target = $region44
        $region43: #{tpu_custom_call.1} parent=35 // pred_region
          %s337 = sand.u32 %s27, 1
          %s338 = scalar_lea.sflag [#allocation7], %s337
          %s339 = sand.u32 %s63, 1
          %s340 = smul.addr %s339, 8
          %s341 = scalar_lea.vmem [#allocation6], %s340
          %343 = vsyncadd %s338, 0
          %s344 = smul.addr %s27, 8
          %s345 = scalar_lea.hbm %s1, %s344
          %s347 = sshll.u32 %s345, 4
          %s348 = int_to_ptr.hbm [resolvable:$true] %s347
          %s349 = sshll.u32 %s341, 4
          %s350 = int_to_ptr.vmem [resolvable:$true] %s349
          %352 = dma.hbm_to_vmem [thread:$0]  %s348, 128, %s350, %s338
        $region44: #{tpu_custom_call.1} parent=35 // pred_fallthru
          _
      $region36: #{tpu_custom_call.1} parent=5 // pred_fallthru
        _
      %p353 = scmp.le.s32.totalorder 1, %s27
      %p354 = scmp.lt.s32.totalorder %s27, 3
      %p355 = pnand %p353, %p354
      %p356 = pneg %p355
      // Predicated region
      $region45: #{tpu_custom_call.1} parent=5 // pred_check
        _
      $region46: #{tpu_custom_call.1} parent=5 // pred_check_branch
        %358 = sbr.rel (%p355) target = $region48
      $region47: #{tpu_custom_call.1} parent=5 // pred_region
        %s359 = ssub.s32 %s27, 1
        %s360 = sand.u32 %s40, 1
        %s361 = scalar_lea.sflag [#allocation4], %s360
        %s362 = sand.u32 %s40, 1
        %s363 = smul.addr %s362, 64
        %s364 = scalar_lea.vmem [#allocation3], %s363
        // Predicated region
        $region49: #{tpu_custom_call.1} parent=47 // pred_check
          %p365 = pneg %p53
        $region50: #{tpu_custom_call.1} parent=47 // pred_check_branch
          %367 = sbr.rel (%p365) target = $region52
        $region51: #{tpu_custom_call.1} parent=47 // pred_region
          %369 = dma.done %s361, 1024
        $region52: #{tpu_custom_call.1} parent=47 // pred_fallthru
          _
        %s370 = sand.u32 %s32, 1
        %s371 = scalar_lea.sflag [#allocation7], %s370
        %s372 = sand.u32 %s66, 1
        %s373 = smul.addr %s372, 8
        %s374 = scalar_lea.vmem [#allocation6], %s373
        // Predicated region
        $region53: #{tpu_custom_call.1} parent=47 // pred_check
          %p375 = pneg %p79
        $region54: #{tpu_custom_call.1} parent=47 // pred_check_branch
          %377 = sbr.rel (%p375) target = $region56
        $region55: #{tpu_custom_call.1} parent=47 // pred_region
          %379 = dma.done %s371, 128
        $region56: #{tpu_custom_call.1} parent=47 // pred_fallthru
          _
        // Predicated region
        $region57: #{tpu_custom_call.1} parent=47 // pred_check
          %p380 = pneg %p100
        $region58: #{tpu_custom_call.1} parent=47 // pred_check_branch
          %382 = sbr.rel (%p380) target = $region60
        $region59: #{tpu_custom_call.1} parent=47 // pred_region
          %384 = dma.done [#allocation7], 128
        $region60: #{tpu_custom_call.1} parent=47 // pred_fallthru
          _
        // Predicated region
        $region61: #{tpu_custom_call.1} parent=47 // pred_check
          %p385 = pneg %p142
        $region62: #{tpu_custom_call.1} parent=47 // pred_check_branch
          %387 = sbr.rel (%p385) target = $region64
        $region63: #{tpu_custom_call.1} parent=47 // pred_region
          %389 = dma.done [#allocation10], 256
        $region64: #{tpu_custom_call.1} parent=47 // pred_fallthru
          _
        // Predicated region
        $region65: #{tpu_custom_call.1} parent=47 // pred_check
          %p390 = pneg %p163
        $region66: #{tpu_custom_call.1} parent=47 // pred_check_branch
          %392 = sbr.rel (%p390) target = $region68
        $region67: #{tpu_custom_call.1} parent=47 // pred_region
          %394 = dma.done [#allocation10], 256
        $region68: #{tpu_custom_call.1} parent=47 // pred_fallthru
          _
        // Predicated region
        $region69: #{tpu_custom_call.1} parent=47 // pred_check
          %p395 = pneg %p184
        $region70: #{tpu_custom_call.1} parent=47 // pred_check_branch
          %397 = sbr.rel (%p395) target = $region72
        $region71: #{tpu_custom_call.1} parent=47 // pred_region
          %399 = dma.done [#allocation13], 256
        $region72: #{tpu_custom_call.1} parent=47 // pred_fallthru
          _
        %s400 = sand.u32 %s40, 1
        %s401 = scalar_lea.sflag [#allocation4], %s400
        %s402 = sand.u32 %s40, 1
        %s403 = smul.addr %s402, 64
        %s404 = scalar_lea.vmem [#allocation3], %s403
        %p405 = pneg %p53
        %p406 = pneg %p50
        %s407 = sand.u32 %s32, 1
        %s408 = scalar_lea.sflag [#allocation7], %s407
        %s409 = sand.u32 %s66, 1
        %s410 = smul.addr %s409, 8
        %s411 = scalar_lea.vmem [#allocation6], %s410
        %p412 = pneg %p79
        %p413 = pneg %p76
        %p414 = pneg %p100
        %p415 = pneg %p97
        %p416 = pneg %p121
        %p417 = pneg %p118
        %p418 = pneg %p142
        %p419 = pneg %p139
        %p420 = pneg %p163
        %p421 = pneg %p160
        %p422 = pneg %p184
        %p423 = pneg %p181
        %p424 = pneg %p210
        %p425 = pneg %p207
        %s426 = sand.u32 %s197, 1
        %s427 = scalar_lea.sflag [#allocation5], %s426
        %s428 = sand.u32 %s197, 1
        %s429 = smul.addr %s428, 8
        %s430 = scalar_lea.vmem [#allocation14], %s429
        %p431 = pneg %p236
        %p432 = pneg %p233
        %p433 = scmp.lt.s32.totalorder %s32, 1
        %s434 = scalar_select %p433, %s32, 1
        %s435 = smul.addr %s434, 8
        %s436 = scalar_lea.vmem %s8, %s435
        %s437 = smul.u32 8, %s32
        %p438 = scmp.lt.s32.totalorder %s32, 1
        %s439 = scalar_select %p438, %s32, 1
        %s440 = smul.addr %s439, 8
        %s441 = scalar_lea.vmem %s8, %s440
        %v443 = vld [vmem:[%s364] sm:$0xff]
        %v444 = vld [vmem:[%s364 + $0x8] sm:$0xff]
        %v445 = vld [vmem:[%s364 + $0x10] sm:$0xff]
        %v446 = vld [vmem:[%s364 + $0x18] sm:$0xff]
        %v447 = vld [vmem:[%s364 + $0x20] sm:$0xff]
        %v448 = vld [vmem:[%s364 + $0x28] sm:$0xff]
        %v449 = vld [vmem:[%s364 + $0x30] sm:$0xff]
        %v450 = vld [vmem:[%s364 + $0x38] sm:$0xff]
        %v451 = vld [vmem:[%s374] sm:$0xff]
        %v452 = vld [vmem:[#allocation8] sm:$0x1]
        %v453 = vld [vmem:[#allocation8 + $0x1] sm:$0x1]
        %v454 = vld [vmem:[#allocation8 + $0x2] sm:$0x1]
        %v455 = vld [vmem:[#allocation8 + $0x3] sm:$0x1]
        %v456 = vld [vmem:[#allocation8 + $0x4] sm:$0x1]
        %v457 = vmax.f32 %v451, 0.0
        %v458 = vperm.slane %v452, 0
        %v459 = vmul.f32 %v443, %v458
        %v460 = vmul.f32 %v444, %v458
        %v461 = vmul.f32 %v445, %v458
        %v462 = vmul.f32 %v446, %v458
        %v463 = vmul.f32 %v447, %v458
        %v464 = vmul.f32 %v448, %v458
        %v465 = vmul.f32 %v449, %v458
        %v466 = vmul.f32 %v450, %v458
        %vm467 = vcmask 261120
        %v468 = vsel %vm467, %v459, 0.0
        %469 = vadd.xlane.f32.xlu0 %v468
        %v470 = vpop.xlane.xlu0 %469
        %v471 = vsel %vm467, %v460, 0.0
        %472 = vadd.xlane.f32.xlu0 %v471
        %v473 = vpop.xlane.xlu0 %472
        %v474 = vsel %vm467, %v461, 0.0
        %475 = vadd.xlane.f32.xlu0 %v474
        %v476 = vpop.xlane.xlu0 %475
        %v477 = vsel %vm467, %v462, 0.0
        %478 = vadd.xlane.f32.xlu0 %v477
        %v479 = vpop.xlane.xlu0 %478
        %v480 = vsel %vm467, %v463, 0.0
        %481 = vadd.xlane.f32.xlu0 %v480
        %v482 = vpop.xlane.xlu0 %481
        %v483 = vsel %vm467, %v464, 0.0
        %484 = vadd.xlane.f32.xlu0 %v483
        %v485 = vpop.xlane.xlu0 %484
        %v486 = vsel %vm467, %v465, 0.0
        %487 = vadd.xlane.f32.xlu0 %v486
        %v488 = vpop.xlane.xlu0 %487
        %v489 = vsel %vm467, %v466, 0.0
        %490 = vadd.xlane.f32.xlu0 %v489
        %v491 = vpop.xlane.xlu0 %490
        %v492 = vperm.slane %v453, 0
        %v493 = vmul.f32 %v457, %v492
        %v494 = vsel %vm467, %v493, 0.0
        %495 = vadd.xlane.f32.xlu0 %v494
        %v496 = vpop.xlane.xlu0 %495
        %v498 = vperm.slane %v496, 0
        %v499 = vperm.slane %v496, 1
        %v500 = vperm.slane %v496, 2
        %v501 = vperm.slane %v496, 3
        %v502 = vperm.slane %v496, 4
        %v503 = vperm.slane %v496, 5
        %v504 = vperm.slane %v496, 6
        %v505 = vperm.slane %v496, 7
        %v514 = vadd.f32 %v470, %v498
        %v515 = vadd.f32 %v473, %v499
        %v516 = vadd.f32 %v476, %v500
        %v517 = vadd.f32 %v479, %v501
        %v518 = vadd.f32 %v482, %v502
        %v519 = vadd.f32 %v485, %v503
        %v520 = vadd.f32 %v488, %v504
        %v521 = vadd.f32 %v491, %v505
        %s522 = sld [smem:[#allocation2]]
        %v523 = vstv %s522
        %v524 = vadd.f32 %v514, %v523
        %v525 = vadd.f32 %v515, %v523
        %v526 = vadd.f32 %v516, %v523
        %v527 = vadd.f32 %v517, %v523
        %v528 = vadd.f32 %v518, %v523
        %v529 = vadd.f32 %v519, %v523
        %v530 = vadd.f32 %v520, %v523
        %v531 = vadd.f32 %v521, %v523
        %vm532 = vcmp.ge.f32.partialorder %v524, 0.0
        %vm533 = vcmp.ge.f32.partialorder %v525, 0.0
        %vm534 = vcmp.ge.f32.partialorder %v526, 0.0
        %vm535 = vcmp.ge.f32.partialorder %v527, 0.0
        %vm536 = vcmp.ge.f32.partialorder %v528, 0.0
        %vm537 = vcmp.ge.f32.partialorder %v529, 0.0
        %vm538 = vcmp.ge.f32.partialorder %v530, 0.0
        %vm539 = vcmp.ge.f32.partialorder %v531, 0.0
        %v540 = vmul.f32 %v524, 0.01
        %v541 = vmul.f32 %v525, 0.01
        %v542 = vmul.f32 %v526, 0.01
        %v543 = vmul.f32 %v527, 0.01
        %v544 = vmul.f32 %v528, 0.01
        %v545 = vmul.f32 %v529, 0.01
        %v546 = vmul.f32 %v530, 0.01
        %v547 = vmul.f32 %v531, 0.01
        %v548 = vsel %vm532, %v524, %v540
        %v549 = vsel %vm533, %v525, %v541
        %v550 = vsel %vm534, %v526, %v542
        %v551 = vsel %vm535, %v527, %v543
        %v552 = vsel %vm536, %v528, %v544
        %v553 = vsel %vm537, %v529, %v545
        %v554 = vsel %vm538, %v530, %v546
        %v555 = vsel %vm539, %v531, %v547
        %564 = vset.pattern.permute.xlu0 0
        %565 = vperm.xlu0 %564, %v548
        %v566 = vpop.permute.xlu0 %565
        %567 = vset.pattern.permute.xlu0 0
        %568 = vperm.xlu0 %567, %v549
        %v569 = vpop.permute.xlu0 %568
        %570 = vset.pattern.permute.xlu0 0
        %571 = vperm.xlu0 %570, %v550
        %v572 = vpop.permute.xlu0 %571
        %573 = vset.pattern.permute.xlu0 0
        %574 = vperm.xlu0 %573, %v551
        %v575 = vpop.permute.xlu0 %574
        %576 = vset.pattern.permute.xlu0 0
        %577 = vperm.xlu0 %576, %v552
        %v578 = vpop.permute.xlu0 %577
        %579 = vset.pattern.permute.xlu0 0
        %580 = vperm.xlu0 %579, %v553
        %v581 = vpop.permute.xlu0 %580
        %582 = vset.pattern.permute.xlu0 0
        %583 = vperm.xlu0 %582, %v554
        %v584 = vpop.permute.xlu0 %583
        %585 = vset.pattern.permute.xlu0 0
        %586 = vperm.xlu0 %585, %v555
        %v587 = vpop.permute.xlu0 %586
        %v588 = vlaneseq
        %v589 = vand.u32 %v588, 127
        %v590 = vperm.slane %v566, %v589
        %v591 = vperm.slane %v569, %v589
        %v592 = vperm.slane %v572, %v589
        %v593 = vperm.slane %v575, %v589
        %v594 = vperm.slane %v578, %v589
        %v595 = vperm.slane %v581, %v589
        %v596 = vperm.slane %v584, %v589
        %v597 = vperm.slane %v587, %v589
        %vm598 = vcmask 1041409
        %v599 = vsel %vm598, %v591, %v590
        %vm600 = vcmask 1042434
        %v601 = vsel %vm600, %v592, %v599
        %vm602 = vcmask 1043459
        %v603 = vsel %vm602, %v593, %v601
        %vm604 = vcmask 1044484
        %v605 = vsel %vm604, %v594, %v603
        %vm606 = vcmask 1045509
        %v607 = vsel %vm606, %v595, %v605
        %vm608 = vcmask 1046534
        %v609 = vsel %vm608, %v596, %v607
        %vm610 = vcmask 1047559
        %v611 = vsel %vm610, %v597, %v609
        %vm613 = vcmask 64512
        %v614 = vsel %vm613, %v611, -inf
        %615 = vmax.xlane.f32.xlu0 %v614
        %v616 = vpop.xlane.xlu0 %615
        %v618 = vperm.slane %v616, 0
        %v619 = vperm.slane %v616, 1
        %v620 = vperm.slane %v616, 2
        %v621 = vperm.slane %v616, 3
        %v622 = vperm.slane %v616, 4
        %v623 = vperm.slane %v616, 5
        %v624 = vperm.slane %v616, 6
        %v625 = vperm.slane %v616, 7
        %v634 = vsub.f32 %v548, %v618
        %v635 = vsub.f32 %v549, %v619
        %v636 = vsub.f32 %v550, %v620
        %v637 = vsub.f32 %v551, %v621
        %v638 = vsub.f32 %v552, %v622
        %v639 = vsub.f32 %v553, %v623
        %v640 = vsub.f32 %v554, %v624
        %v641 = vsub.f32 %v555, %v625
        %v642 = vmul.f32 %v634, 1.442695
        %v643 = vpow.pop %v642
        %v644 = vmul.f32 %v635, 1.442695
        %v645 = vpow.pop %v644
        %v646 = vmul.f32 %v636, 1.442695
        %v647 = vpow.pop %v646
        %v648 = vmul.f32 %v637, 1.442695
        %v649 = vpow.pop %v648
        %v650 = vmul.f32 %v638, 1.442695
        %v651 = vpow.pop %v650
        %v652 = vmul.f32 %v639, 1.442695
        %v653 = vpow.pop %v652
        %v654 = vmul.f32 %v640, 1.442695
        %v655 = vpow.pop %v654
        %v656 = vmul.f32 %v641, 1.442695
        %v657 = vpow.pop %v656
        %666 = vset.pattern.permute.xlu0 0
        %667 = vperm.xlu0 %666, %v643
        %v668 = vpop.permute.xlu0 %667
        %669 = vset.pattern.permute.xlu0 0
        %670 = vperm.xlu0 %669, %v645
        %v671 = vpop.permute.xlu0 %670
        %672 = vset.pattern.permute.xlu0 0
        %673 = vperm.xlu0 %672, %v647
        %v674 = vpop.permute.xlu0 %673
        %675 = vset.pattern.permute.xlu0 0
        %676 = vperm.xlu0 %675, %v649
        %v677 = vpop.permute.xlu0 %676
        %678 = vset.pattern.permute.xlu0 0
        %679 = vperm.xlu0 %678, %v651
        %v680 = vpop.permute.xlu0 %679
        %681 = vset.pattern.permute.xlu0 0
        %682 = vperm.xlu0 %681, %v653
        %v683 = vpop.permute.xlu0 %682
        %684 = vset.pattern.permute.xlu0 0
        %685 = vperm.xlu0 %684, %v655
        %v686 = vpop.permute.xlu0 %685
        %687 = vset.pattern.permute.xlu0 0
        %688 = vperm.xlu0 %687, %v657
        %v689 = vpop.permute.xlu0 %688
        %v690 = vperm.slane %v668, %v589
        %v691 = vperm.slane %v671, %v589
        %v692 = vperm.slane %v674, %v589
        %v693 = vperm.slane %v677, %v589
        %v694 = vperm.slane %v680, %v589
        %v695 = vperm.slane %v683, %v589
        %v696 = vperm.slane %v686, %v589
        %v697 = vperm.slane %v689, %v589
        %v698 = vsel %vm598, %v691, %v690
        %v699 = vsel %vm600, %v692, %v698
        %v700 = vsel %vm602, %v693, %v699
        %v701 = vsel %vm604, %v694, %v700
        %v702 = vsel %vm606, %v695, %v701
        %v703 = vsel %vm608, %v696, %v702
        %v704 = vsel %vm610, %v697, %v703
        %v706 = vsel %vm613, %v704, 0.0
        %707 = vadd.xlane.f32.xlu0 %v706
        %v708 = vpop.xlane.xlu0 %707
        %v710 = vperm.slane %v708, 0
        %v711 = vperm.slane %v708, 1
        %v712 = vperm.slane %v708, 2
        %v713 = vperm.slane %v708, 3
        %v714 = vperm.slane %v708, 4
        %v715 = vperm.slane %v708, 5
        %v716 = vperm.slane %v708, 6
        %v717 = vperm.slane %v708, 7
        %v726 = vrcp.pop %v710
        %v727 = vmul.f32 %v710, %v726
        %v728 = vsub.f32 1.0, %v727
        %v729 = vmul.f32 %v726, %v728
        %v730 = vadd.f32 %v726, %v729
        %vm731 = vweird.f32 %v710
        %vm732 = vweird.f32 %v726
        %vm733 = vmor %vm731, %vm732
        %v734 = vsel %vm733, %v726, %v730
        %v735 = vand.u32 2147483647, %v710
        %vm736 = vcmp.eq.f32.partialorder %v735, 8.507059e+37
        %v737 = vand.u32 %v710, 2147483648
        %v738 = vor.u32 1.1754944e-38, %v737
        %v739 = vsel %vm736, %v738, %v734
        %v740 = vmul.f32 %v643, %v739
        %v741 = vrcp.pop %v711
        %v742 = vmul.f32 %v711, %v741
        %v743 = vsub.f32 1.0, %v742
        %v744 = vmul.f32 %v741, %v743
        %v745 = vadd.f32 %v741, %v744
        %vm746 = vweird.f32 %v711
        %vm747 = vweird.f32 %v741
        %vm748 = vmor %vm746, %vm747
        %v749 = vsel %vm748, %v741, %v745
        %v750 = vand.u32 2147483647, %v711
        %vm751 = vcmp.eq.f32.partialorder %v750, 8.507059e+37
        %v752 = vand.u32 %v711, 2147483648
        %v753 = vor.u32 1.1754944e-38, %v752
        %v754 = vsel %vm751, %v753, %v749
        %v755 = vmul.f32 %v645, %v754
        %v756 = vrcp.pop %v712
        %v757 = vmul.f32 %v712, %v756
        %v758 = vsub.f32 1.0, %v757
        %v759 = vmul.f32 %v756, %v758
        %v760 = vadd.f32 %v756, %v759
        %vm761 = vweird.f32 %v712
        %vm762 = vweird.f32 %v756
        %vm763 = vmor %vm761, %vm762
        %v764 = vsel %vm763, %v756, %v760
        %v765 = vand.u32 2147483647, %v712
        %vm766 = vcmp.eq.f32.partialorder %v765, 8.507059e+37
        %v767 = vand.u32 %v712, 2147483648
        %v768 = vor.u32 1.1754944e-38, %v767
        %v769 = vsel %vm766, %v768, %v764
        %v770 = vmul.f32 %v647, %v769
        %v771 = vrcp.pop %v713
        %v772 = vmul.f32 %v713, %v771
        %v773 = vsub.f32 1.0, %v772
        %v774 = vmul.f32 %v771, %v773
        %v775 = vadd.f32 %v771, %v774
        %vm776 = vweird.f32 %v713
        %vm777 = vweird.f32 %v771
        %vm778 = vmor %vm776, %vm777
        %v779 = vsel %vm778, %v771, %v775
        %v780 = vand.u32 2147483647, %v713
        %vm781 = vcmp.eq.f32.partialorder %v780, 8.507059e+37
        %v782 = vand.u32 %v713, 2147483648
        %v783 = vor.u32 1.1754944e-38, %v782
        %v784 = vsel %vm781, %v783, %v779
        %v785 = vmul.f32 %v649, %v784
        %v786 = vrcp.pop %v714
        %v787 = vmul.f32 %v714, %v786
        %v788 = vsub.f32 1.0, %v787
        %v789 = vmul.f32 %v786, %v788
        %v790 = vadd.f32 %v786, %v789
        %vm791 = vweird.f32 %v714
        %vm792 = vweird.f32 %v786
        %vm793 = vmor %vm791, %vm792
        %v794 = vsel %vm793, %v786, %v790
        %v795 = vand.u32 2147483647, %v714
        %vm796 = vcmp.eq.f32.partialorder %v795, 8.507059e+37
        %v797 = vand.u32 %v714, 2147483648
        %v798 = vor.u32 1.1754944e-38, %v797
        %v799 = vsel %vm796, %v798, %v794
        %v800 = vmul.f32 %v651, %v799
        %v801 = vrcp.pop %v715
        %v802 = vmul.f32 %v715, %v801
        %v803 = vsub.f32 1.0, %v802
        %v804 = vmul.f32 %v801, %v803
        %v805 = vadd.f32 %v801, %v804
        %vm806 = vweird.f32 %v715
        %vm807 = vweird.f32 %v801
        %vm808 = vmor %vm806, %vm807
        %v809 = vsel %vm808, %v801, %v805
        %v810 = vand.u32 2147483647, %v715
        %vm811 = vcmp.eq.f32.partialorder %v810, 8.507059e+37
        %v812 = vand.u32 %v715, 2147483648
        %v813 = vor.u32 1.1754944e-38, %v812
        %v814 = vsel %vm811, %v813, %v809
        %v815 = vmul.f32 %v653, %v814
        %v816 = vrcp.pop %v716
        %v817 = vmul.f32 %v716, %v816
        %v818 = vsub.f32 1.0, %v817
        %v819 = vmul.f32 %v816, %v818
        %v820 = vadd.f32 %v816, %v819
        %vm821 = vweird.f32 %v716
        %vm822 = vweird.f32 %v816
        %vm823 = vmor %vm821, %vm822
        %v824 = vsel %vm823, %v816, %v820
        %v825 = vand.u32 2147483647, %v716
        %vm826 = vcmp.eq.f32.partialorder %v825, 8.507059e+37
        %v827 = vand.u32 %v716, 2147483648
        %v828 = vor.u32 1.1754944e-38, %v827
        %v829 = vsel %vm826, %v828, %v824
        %v830 = vmul.f32 %v655, %v829
        %v831 = vrcp.pop %v717
        %v832 = vmul.f32 %v717, %v831
        %v833 = vsub.f32 1.0, %v832
        %v834 = vmul.f32 %v831, %v833
        %v835 = vadd.f32 %v831, %v834
        %vm836 = vweird.f32 %v717
        %vm837 = vweird.f32 %v831
        %vm838 = vmor %vm836, %vm837
        %v839 = vsel %vm838, %v831, %v835
        %v840 = vand.u32 2147483647, %v717
        %vm841 = vcmp.eq.f32.partialorder %v840, 8.507059e+37
        %v842 = vand.u32 %v717, 2147483648
        %v843 = vor.u32 1.1754944e-38, %v842
        %v844 = vsel %vm841, %v843, %v839
        %v845 = vmul.f32 %v657, %v844
        %847 = vset.pattern.permute.xlu0 0
        %848 = vperm.xlu0 %847, %v740
        %v849 = vpop.permute.xlu0 %848
        %852 = vset.pattern.permute.xlu0 0
        %853 = vperm.xlu0 %852, %v755
        %v854 = vpop.permute.xlu0 %853
        %857 = vset.pattern.permute.xlu0 0
        %858 = vperm.xlu0 %857, %v770
        %v859 = vpop.permute.xlu0 %858
        %862 = vset.pattern.permute.xlu0 0
        %863 = vperm.xlu0 %862, %v785
        %v864 = vpop.permute.xlu0 %863
        %867 = vset.pattern.permute.xlu0 0
        %868 = vperm.xlu0 %867, %v800
        %v869 = vpop.permute.xlu0 %868
        %872 = vset.pattern.permute.xlu0 0
        %873 = vperm.xlu0 %872, %v815
        %v874 = vpop.permute.xlu0 %873
        %877 = vset.pattern.permute.xlu0 0
        %878 = vperm.xlu0 %877, %v830
        %v879 = vpop.permute.xlu0 %878
        %882 = vset.pattern.permute.xlu0 0
        %883 = vperm.xlu0 %882, %v845
        %v884 = vpop.permute.xlu0 %883
        %v886 = vmul.f32 %v849, %v443
        %v887 = vmul.f32 %v854, %v444
        %v888 = vmul.f32 %v859, %v445
        %v889 = vmul.f32 %v864, %v446
        %v890 = vmul.f32 %v869, %v447
        %v891 = vmul.f32 %v874, %v448
        %v892 = vmul.f32 %v879, %v449
        %v893 = vmul.f32 %v884, %v450
        %v894 = vsel %vm467, %v886, 0.0
        %v895 = vrot.slane %v894, 4
        %v896 = vadd.f32 %v894, %v895
        %v897 = vrot.slane %v896, 2
        %v898 = vadd.f32 %v896, %v897
        %v899 = vrot.slane %v898, 1
        %v900 = vadd.f32 %v898, %v899
        %v901 = vsel %vm467, %v887, 0.0
        %v902 = vrot.slane %v901, 4
        %v903 = vadd.f32 %v901, %v902
        %v904 = vrot.slane %v903, 2
        %v905 = vadd.f32 %v903, %v904
        %v906 = vrot.slane %v905, 1
        %v907 = vadd.f32 %v905, %v906
        %v908 = vsel %vm467, %v888, 0.0
        %v909 = vrot.slane %v908, 4
        %v910 = vadd.f32 %v908, %v909
        %v911 = vrot.slane %v910, 2
        %v912 = vadd.f32 %v910, %v911
        %v913 = vrot.slane %v912, 1
        %v914 = vadd.f32 %v912, %v913
        %v915 = vsel %vm467, %v889, 0.0
        %v916 = vrot.slane %v915, 4
        %v917 = vadd.f32 %v915, %v916
        %v918 = vrot.slane %v917, 2
        %v919 = vadd.f32 %v917, %v918
        %v920 = vrot.slane %v919, 1
        %v921 = vadd.f32 %v919, %v920
        %v922 = vsel %vm467, %v890, 0.0
        %v923 = vrot.slane %v922, 4
        %v924 = vadd.f32 %v922, %v923
        %v925 = vrot.slane %v924, 2
        %v926 = vadd.f32 %v924, %v925
        %v927 = vrot.slane %v926, 1
        %v928 = vadd.f32 %v926, %v927
        %v929 = vsel %vm467, %v891, 0.0
        %v930 = vrot.slane %v929, 4
        %v931 = vadd.f32 %v929, %v930
        %v932 = vrot.slane %v931, 2
        %v933 = vadd.f32 %v931, %v932
        %v934 = vrot.slane %v933, 1
        %v935 = vadd.f32 %v933, %v934
        %v936 = vsel %vm467, %v892, 0.0
        %v937 = vrot.slane %v936, 4
        %v938 = vadd.f32 %v936, %v937
        %v939 = vrot.slane %v938, 2
        %v940 = vadd.f32 %v938, %v939
        %v941 = vrot.slane %v940, 1
        %v942 = vadd.f32 %v940, %v941
        %v943 = vsel %vm467, %v893, 0.0
        %v944 = vrot.slane %v943, 4
        %v945 = vadd.f32 %v943, %v944
        %v946 = vrot.slane %v945, 2
        %v947 = vadd.f32 %v945, %v946
        %v948 = vrot.slane %v947, 1
        %v949 = vadd.f32 %v947, %v948
        %v950 = vpack.c.bf16 %v900, %v900
        %v951 = vpack.c.bf16 %v907, %v907
        %v952 = vpack.c.bf16 %v914, %v914
        %v953 = vpack.c.bf16 %v921, %v921
        %v954 = vpack.c.bf16 %v928, %v928
        %v955 = vpack.c.bf16 %v935, %v935
        %v956 = vpack.c.bf16 %v942, %v942
        %v957 = vpack.c.bf16 %v949, %v949
        %v958 = vld [vmem:[#allocation9] sm:$0xf]
        %v959 = vld [vmem:[#allocation9 + $0x4] sm:$0xf]
        %v960 = vld [vmem:[#allocation9 + $0x8] sm:$0xf]
        %v961 = vld [vmem:[#allocation9 + $0xc] sm:$0xf]
        %v962 = vperm.slane %v454, 0
        %v971 = vunpack.c.l.b16 %v950
        %v972 = vunpack.c.l.b16 %v951
        %v973 = vunpack.c.l.b16 %v952
        %v974 = vunpack.c.l.b16 %v953
        %v975 = vunpack.c.l.b16 %v954
        %v976 = vunpack.c.l.b16 %v955
        %v977 = vunpack.c.l.b16 %v956
        %v978 = vunpack.c.l.b16 %v957
        %v979 = vsel %vm598, %v972, %v971
        %v980 = vsel %vm600, %v973, %v979
        %v981 = vsel %vm602, %v974, %v980
        %v982 = vsel %vm604, %v975, %v981
        %v983 = vsel %vm606, %v976, %v982
        %v984 = vsel %vm608, %v977, %v983
        %v985 = vsel %vm610, %v978, %v984
        %v986 = vpack.c.b16 %v985, %v985
        %v991 = vunpack.c.l.b16 %v958
        %v992 = vunpack.c.l.b16 %v959
        %v993 = vunpack.c.l.b16 %v960
        %v994 = vunpack.c.l.b16 %v961
        %v995 = vpack.c.b16 %v992, %v991
        %v996 = vpack.c.b16 %v994, %v993
        %v1000 = vsel %vm467, %v986, 0
        %1002 = vmatpush.bf16.msra.mxu0 0
        %1003 = vmatpush.bf16.msra.mxu0 0
        %1004 = vmatpush.bf16.msra.mxu0 0
        %1005 = vmatpush.bf16.msra.mxu0 0
        %1006 = vmatpush.bf16.msra.mxu0 0
        %1007 = vmatpush.bf16.msra.mxu0 0
        %1008 = vmatpush.bf16.msra.mxu0 %v996
        %1009 = vmatpush.bf16.msra.mxu0 %v995
        %1010 = vmatmul.bf16.gmra.mxu0 %v1000
        %v1011 = vpop.f32.mrf.mxu0
        %v1012 = vadd.f32 %v962, %v1011
        %v1013 = vpop.f32.mrf.mxu0
        %1014 = vdwg.mxu0
        %vm1015 = vcmp.gt.f32.partialorder %v1012, 0.0
        %v1016 = vmin.f32 %v1012, 0.0
        %v1017 = vmul.f32 %v1016, 1.442695
        %v1018 = vpow.pop %v1017
        %v1019 = vsub.f32 %v1018, 1.0
        %v1020 = vsel %vm1015, %v1012, %v1019
        %v1021 = vpack.c.bf16 %v1020, %v1020
        %v1022 = vld [vmem:[#allocation11] sm:$0xf]
        %v1023 = vld [vmem:[#allocation11 + $0x4] sm:$0xf]
        %v1024 = vld [vmem:[#allocation11 + $0x8] sm:$0xf]
        %v1025 = vld [vmem:[#allocation11 + $0xc] sm:$0xf]
        %v1026 = vperm.slane %v455, 0
        %v1031 = vunpack.c.l.b16 %v1022
        %v1032 = vunpack.c.l.b16 %v1023
        %v1033 = vunpack.c.l.b16 %v1024
        %v1034 = vunpack.c.l.b16 %v1025
        %v1035 = vpack.c.b16 %v1032, %v1031
        %v1036 = vpack.c.b16 %v1034, %v1033
        %v1040 = vsel %vm467, %v1021, 0
        %1042 = vmatpush.bf16.msra.mxu0 0
        %1043 = vmatpush.bf16.msra.mxu0 0
        %1044 = vmatpush.bf16.msra.mxu0 0
        %1045 = vmatpush.bf16.msra.mxu0 0
        %1046 = vmatpush.bf16.msra.mxu0 0
        %1047 = vmatpush.bf16.msra.mxu0 0
        %1048 = vmatpush.bf16.msra.mxu0 %v1036
        %1049 = vmatpush.bf16.msra.mxu0 %v1035
        %1050 = vmatmul.bf16.gmra.mxu0 %v1040
        %v1051 = vpop.f32.mrf.mxu0
        %v1052 = vadd.f32 %v1026, %v1051
        %v1053 = vpop.f32.mrf.mxu0
        %1054 = vdwg.mxu0
        %v1055 = vpack.c.bf16 %v451, %v451
        %v1056 = vld [vmem:[#allocation12] sm:$0xf]
        %v1057 = vld [vmem:[#allocation12 + $0x4] sm:$0xf]
        %v1058 = vld [vmem:[#allocation12 + $0x8] sm:$0xf]
        %v1059 = vld [vmem:[#allocation12 + $0xc] sm:$0xf]
        %v1060 = vperm.slane %v456, 0
        %v1065 = vunpack.c.l.b16 %v1056
        %v1066 = vunpack.c.l.b16 %v1057
        %v1067 = vunpack.c.l.b16 %v1058
        %v1068 = vunpack.c.l.b16 %v1059
        %v1069 = vpack.c.b16 %v1066, %v1065
        %v1070 = vpack.c.b16 %v1068, %v1067
        %v1074 = vsel %vm467, %v1055, 0
        %1076 = vmatpush.bf16.msra.mxu0 0
        %1077 = vmatpush.bf16.msra.mxu0 0
        %1078 = vmatpush.bf16.msra.mxu0 0
        %1079 = vmatpush.bf16.msra.mxu0 0
        %1080 = vmatpush.bf16.msra.mxu0 0
        %1081 = vmatpush.bf16.msra.mxu0 0
        %1082 = vmatpush.bf16.msra.mxu0 %v1070
        %1083 = vmatpush.bf16.msra.mxu0 %v1069
        %1084 = vmatmul.bf16.gmra.mxu0 %v1074
        %v1085 = vpop.f32.mrf.mxu0
        %v1086 = vadd.f32 %v1060, %v1085
        %v1087 = vpop.f32.mrf.mxu0
        %1088 = vdwg.mxu0
        %v1089 = vadd.f32 %v1052, %v1086
        %v1090 = vxor.u32 %v1089, 2147483648
        %v1091 = vmul.f32 %v1090, 1.442695
        %v1092 = vpow.pop %v1091
        %v1093 = vadd.f32 %v1092, 1.0
        %v1094 = vrcp.pop %v1093
        %v1095 = vmul.f32 %v1093, %v1094
        %v1096 = vsub.f32 1.0, %v1095
        %v1097 = vmul.f32 %v1094, %v1096
        %v1098 = vadd.f32 %v1094, %v1097
        %vm1099 = vweird.f32 %v1093
        %vm1100 = vweird.f32 %v1094
        %vm1101 = vmor %vm1099, %vm1100
        %v1102 = vsel %vm1101, %v1094, %v1098
        %v1103 = vand.u32 2147483647, %v1093
        %vm1104 = vcmp.eq.f32.partialorder %v1103, 8.507059e+37
        %v1105 = vand.u32 %v1093, 2147483648
        %v1106 = vor.u32 1.1754944e-38, %v1105
        %v1107 = vsel %vm1104, %v1106, %v1102
        %v1108 = vmul.f32 1.0, %v1107
        %1110 = vrot.lane.b32.xlu0 %v1086, 64
        %v1111 = vpop.permute.xlu0 %1110
        %v1113 = vmul.f32 %v1108, %v1111
        %1115 = vrot.lane.b32.xlu0 %v1113, 64
        %v1116 = vpop.permute.xlu0 %1115
        %v1118 = vadd.f32 %v1052, %v1116
        %v1119 = vtanh.pop %v1118
        %v1120 = vsub.f32 1.0, %v1108
        %1122 = vrot.lane.b32.xlu0 %v1119, 96
        %v1123 = vpop.permute.xlu0 %1122
        %v1125 = vmul.f32 %v1120, %v1123
        %1127 = vrot.lane.b32.xlu0 %v451, 32
        %v1128 = vpop.permute.xlu0 %1127
        %v1130 = vmul.f32 %v1108, %v1128
        %v1131 = vadd.f32 %v1125, %v1130
        %1133 = vrot.lane.b32.xlu0 %v1131, 96
        %v1134 = vpop.permute.xlu0 %1133
        %1136 = vst.msk [vmem:[%s430] sm:$0xff] %vm467, %v1134
        %v1137 = vperm.slane %v849, %v589
        %v1138 = vperm.slane %v854, %v589
        %v1139 = vperm.slane %v859, %v589
        %v1140 = vperm.slane %v864, %v589
        %v1141 = vperm.slane %v869, %v589
        %v1142 = vperm.slane %v874, %v589
        %v1143 = vperm.slane %v879, %v589
        %v1144 = vperm.slane %v884, %v589
        %v1145 = vsel %vm598, %v1138, %v1137
        %v1146 = vsel %vm600, %v1139, %v1145
        %v1147 = vsel %vm602, %v1140, %v1146
        %v1148 = vsel %vm604, %v1141, %v1147
        %v1149 = vsel %vm606, %v1142, %v1148
        %v1150 = vsel %vm608, %v1143, %v1149
        %v1151 = vsel %vm610, %v1144, %v1150
        %1153 = vst.msk [vmem:[%s441] sm:$0xff] %vm613, %v1151
        %s1154 = sand.u32 %s197, 1
        %s1155 = scalar_lea.sflag [#allocation5], %s1154
        %s1156 = sand.u32 %s197, 1
        %s1157 = smul.addr %s1156, 8
        %s1158 = scalar_lea.vmem [#allocation14], %s1157
        %p1159 = scmp.lt.s32.totalorder %s32, 1
        %s1160 = scalar_select %p1159, %s32, 1
        %s1161 = smul.addr %s1160, 8
        %s1162 = scalar_lea.vmem %s8, %s1161
        // Predicated region
        $region73: #{tpu_custom_call.1} parent=47 // pred_check
          %p1163 = pneg %p207
        $region74: #{tpu_custom_call.1} parent=47 // pred_check_branch
          %1165 = sbr.rel (%p1163) target = $region76
        $region75: #{tpu_custom_call.1} parent=47 // pred_region
          %1167 = vsyncadd %s1155, 0
          %s1168 = smul.addr %s32, 8
          %s1169 = scalar_lea.hbm %s7, %s1168
          %s1171 = sshll.u32 %s1158, 4
          %s1172 = int_to_ptr.vmem [resolvable:$true] %s1171
          %s1173 = sshll.u32 %s1169, 4
          %s1174 = int_to_ptr.hbm [resolvable:$true] %s1173
          %1176 = dma.vmem_to_hbm [thread:$0]  %s1172, 128, %s1174, %s1155
        $region76: #{tpu_custom_call.1} parent=47 // pred_fallthru
          _
        // Predicated region
        $region77: #{tpu_custom_call.1} parent=47 // pred_check
          %p1177 = pneg %p233
        $region78: #{tpu_custom_call.1} parent=47 // pred_check_branch
          %1179 = sbr.rel (%p1177) target = $region80
        $region79: #{tpu_custom_call.1} parent=47 // pred_region
          _
        $region80: #{tpu_custom_call.1} parent=47 // pred_fallthru
          _
      $region48: #{tpu_custom_call.1} parent=5 // pred_fallthru
        _
      %p1180 = scmp.le.s32.totalorder 2, %s27
      // Predicated region
      $region81: #{tpu_custom_call.1} parent=5 // pred_check
        %p1181 = pneg %p1180
      $region82: #{tpu_custom_call.1} parent=5 // pred_check_branch
        %1183 = sbr.rel (%p1181) target = $region84
      $region83: #{tpu_custom_call.1} parent=5 // pred_region
        %s1184 = ssub.s32 %s27, 2
        // Predicated region
        $region85: #{tpu_custom_call.1} parent=83 // pred_check
          %p1185 = pneg %p213
        $region86: #{tpu_custom_call.1} parent=83 // pred_check_branch
          %1187 = sbr.rel (%p1185) target = $region88
        $region87: #{tpu_custom_call.1} parent=83 // pred_region
          %s1188 = sand.u32 %s198, 1
          %s1189 = scalar_lea.sflag [#allocation5], %s1188
          %s1190 = sand.u32 %s198, 1
          %s1191 = smul.addr %s1190, 8
          %s1192 = scalar_lea.vmem [#allocation14], %s1191
          %1194 = dma.done %s1189, 128
        $region88: #{tpu_custom_call.1} parent=83 // pred_fallthru
          _
        // Predicated region
        $region89: #{tpu_custom_call.1} parent=83 // pred_check
          %p1195 = pneg %p239
        $region90: #{tpu_custom_call.1} parent=83 // pred_check_branch
          %1197 = sbr.rel (%p1195) target = $region92
        $region91: #{tpu_custom_call.1} parent=83 // pred_region
          %p1198 = scmp.lt.s32.totalorder %s33, 1
          %s1199 = scalar_select %p1198, %s33, 1
          %s1200 = smul.addr %s1199, 8
          %s1201 = scalar_lea.vmem %s8, %s1200
        $region92: #{tpu_custom_call.1} parent=83 // pred_fallthru
          _
      $region84: #{tpu_custom_call.1} parent=5 // pred_fallthru
        _
    $region6: #{tpu_custom_call.1} parent=1 // loop_footer
      %s31 = sadd.s32 1, %s27
    $region7: #{tpu_custom_call.1} parent=1 // loop_footer_branch
      %26 = sbr.rel target = $region3
    $region8: #{tpu_custom_call.1} parent=1 // loop_exit
      _
    %1202 = vsyncpa [#allocation4], 1
    %s1203 = scalar_lea.sflag [#allocation4], 1
    %1204 = vsyncpa %s1203, 1
    %1205 = vsyncpa [#allocation7], 1
    %s1206 = scalar_lea.sflag [#allocation7], 1
    %1207 = vsyncpa %s1206, 1
    %1208 = vsyncpa [#allocation10], 1
    %1209 = vsyncpa [#allocation13], 1
    %1210 = vsyncpa [#allocation5], 1
    %s1211 = scalar_lea.sflag [#allocation5], 1
    %1212 = vsyncpa %s1211, 1

</llo_original>
